<compile_context>
chip_gen: v6e
topology: v6e:2x2x1
jax: 0.10.0
libtpu: 0.0.40
codegen_flags: <defaults>
</compile_context>

<pallas_src>
import functools

import jax
import jax.numpy as jnp
from jax.experimental import pallas as pl
from jax.experimental.pallas import tpu as pltpu


def _round_up(x, m):
    return ((x + m - 1) // m) * m


def _gru_step(x_pad, h, w_big, b_all):
    """One fused GRUCell step (shared by both kernels and the JAX reference).

    x_pad : [N, F_pad] f32   obs zero-padded to a 128-lane multiple
    h     : [N, H]     f32   previous hidden state
    w_big : [F_pad+H, 4H] (bf16) packed weights:
              cols [0,2H):  rows [0,F) = W_ih[:2H].T,  rows [F_pad,:) = W_hh[:2H].T
              cols [2H,3H): rows [0,F) = W_ih[2H:].T,  hidden rows zero
              cols [3H,4H): input rows zero,           rows [F_pad,:) = W_hh[2H:].T
    b_all : [1, 4H] f32 = [ b_ir+b_hr | b_iz+b_hz | b_in | b_hn ]
    """
    H = h.shape[-1]
    mm_dtype = w_big.dtype
    # Lane-aligned concat (offset F_pad is a multiple of 128) -> cheap.
    xh = jnp.concatenate([x_pad, h], axis=-1).astype(mm_dtype)           # [N, F_pad+H]
    # Single MXU issue computes all gate pre-activations for both paths.
    g = jnp.dot(xh, w_big, preferred_element_type=jnp.float32) + b_all   # [N, 4H]
    rz = jax.nn.sigmoid(g[:, : 2 * H])
    r = rz[:, :H]
    z = rz[:, H:]
    # g[:, 2H:3H] = i_n + b_in ;  g[:, 3H:] = h_n + b_hn  (b_hn correctly inside r*(...))
    n = jnp.tanh(g[:, 2 * H : 3 * H] + r * g[:, 3 * H :])
    return (1.0 - z) * n + z * h


# ------------------------------- kernels ----------------------------------


def _gru_cell_kernel(x_ref, h_ref, w_big_ref, b_all_ref, out_ref):
    """Single GRU step (the module's forward)."""
    out_ref[...] = _gru_step(
        x_ref[...], h_ref[...], w_big_ref[...], b_all_ref[...]
    ).astype(out_ref.dtype)


def _gru_rollout_kernel(x_ref, h0_ref, w_big_ref, b_all_ref, out_ref, h_scr):
    """T-step GRU rollout: grid=(T,), weights resident, hidden carried in VMEM."""
    t = pl.program_id(0)

    @pl.when(t == 0)
    def _():
        h_scr[...] = h0_ref[...]

    h_new = _gru_step(x_ref[0], h_scr[...], w_big_ref[...], b_all_ref[...])
    h_scr[...] = h_new
    out_ref[0] = h_new.astype(out_ref.dtype)


# ------------------------------ wrappers -----------------------------------


@jax.jit
def gru_cell_pallas(x, h, w_big, b_all):
    """Single fused GRUCell step.  x:[N,F] f32, h:[N,H] f32."""
    N, F = x.shape
    H = h.shape[-1]
    F_pad = w_big.shape[0] - H
    assert b_all.shape == (1, 4 * H)
    x_pad = jnp.pad(x, ((0, 0), (0, F_pad - F))) if F_pad != F else x

    full = lambda a: pl.BlockSpec(a.shape, lambda: (0,) * a.ndim)
    return pl.pallas_call(
        _gru_cell_kernel,
        out_shape=jax.ShapeDtypeStruct((N, H), jnp.float32),
        grid_spec=pltpu.PrefetchScalarGridSpec(
            num_scalar_prefetch=0,
            grid=(),
            in_specs=[full(x_pad), full(h), full(w_big), full(b_all)],
            out_specs=pl.BlockSpec((N, H), lambda: (0, 0)),
        ),
    )(x_pad, h, w_big, b_all)


@jax.jit
def gru_rollout_pallas(obs_seq, h0, w_big, b_all):
    """T GRU steps in ONE pallas_call (amortizes launch + weight DMA).

    obs_seq:[T,N,F] f32, h0:[N,H] f32 -> all hidden states [T,N,H] f32.
    """
    T, N, F = obs_seq.shape
    H = h0.shape[-1]
    F_pad = w_big.shape[0] - H
    assert b_all.shape == (1, 4 * H)
    obs_pad = (jnp.pad(obs_seq, ((0, 0), (0, 0), (0, F_pad - F)))
               if F_pad != F else obs_seq)

    return pl.pallas_call(
        _gru_rollout_kernel,
        out_shape=jax.ShapeDtypeStruct((T, N, H), jnp.float32),
        grid_spec=pltpu.PrefetchScalarGridSpec(
            num_scalar_prefetch=0,
            grid=(T,),
            in_specs=[
                pl.BlockSpec((1, N, F_pad), lambda t: (t, 0, 0)),    # obs[t] streamed
                pl.BlockSpec((N, H), lambda t: (0, 0)),              # h0: DMA'd once
                pl.BlockSpec((F_pad + H, 4 * H), lambda t: (0, 0)),  # weights resident
                pl.BlockSpec((1, 4 * H), lambda t: (0, 0)),          # biases resident
            ],
            out_specs=pl.BlockSpec((1, N, H), lambda t: (t, 0, 0)),
            scratch_shapes=[pltpu.VMEM((N, H), jnp.float32)],        # carried hidden
        ),
        compiler_params=pltpu.CompilerParams(
            # Time recurrence is inherently sequential.
            dimension_semantics=("arbitrary",),
        ),
    )(obs_pad, h0, w_big, b_all)


# ------------------------------ module -------------------------------------


class BackbonePallas:
    """JAX/Pallas re-implementation of the PyTorch Backbone module."""

    def __init__(self, feat_dim, hidden_size, num_players, key,
                 matmul_dtype=jnp.bfloat16):
        self.feat_dim = feat_dim
        self.hidden_size = hidden_size
        self.num_players = num_players
        self.matmul_dtype = matmul_dtype

        H, F = hidden_size, feat_dim
        # Deterministic init mimicking nn.GRUCell default: U(-1/sqrt(H), 1/sqrt(H)).
        k = 1.0 / jnp.sqrt(jnp.float32(H))
        k1, k2, k3, k4 = jax.random.split(key, 4)
        # Raw PyTorch-layout parameters (kept for reference / export parity).
        self.weight_ih = jax.random.uniform(k1, (3 * H, F), jnp.float32, -k, k)
        self.weight_hh = jax.random.uniform(k2, (3 * H, H), jnp.float32, -k, k)
        self.bias_ih = jax.random.uniform(k3, (3 * H,), jnp.float32, -k, k)
        self.bias_hh = jax.random.uniform(k4, (3 * H,), jnp.float32, -k, k)

        # ---- One-time fused-weight prep (hoisted out of forward) ----
        F_pad = _round_up(F, 128)
        self.F_pad = F_pad
        w_big = jnp.zeros((F_pad + H, 4 * H), jnp.float32)
        w_big = w_big.at[:F, : 2 * H].set(self.weight_ih[: 2 * H].T)      # r|z input path
        w_big = w_big.at[F_pad:, : 2 * H].set(self.weight_hh[: 2 * H].T)  # r|z hidden path
        w_big = w_big.at[:F, 2 * H : 3 * H].set(self.weight_ih[2 * H :].T)  # n input path
        w_big = w_big.at[F_pad:, 3 * H :].set(self.weight_hh[2 * H :].T)    # n hidden path
        self.w_big = w_big.astype(matmul_dtype)
        # Biases stay exact f32 (not folded into bf16 weights).
        self.b_all = jnp.concatenate([
            self.bias_ih[: 2 * H] + self.bias_hh[: 2 * H],  # b_ir+b_hr | b_iz+b_hz
            self.bias_ih[2 * H :],                          # b_in
            self.bias_hh[2 * H :],                          # b_hn
        ]).reshape(1, 4 * H)

    def forward(self, state, obs, rnn_states, masks):
        # NOTE: `masks` accepted but never applied — matches the original module.
        if obs is None or rnn_states is None:
            raise ValueError('observations and rnn_states cannot be None')
        obs = jnp.asarray(obs, dtype=jnp.float32)
        rnn_states = jnp.asarray(rnn_states, dtype=jnp.float32)
        if rnn_states.shape[-1] != self.hidden_size:
            raise ValueError(
                f'Expected rnn_states with last dimension {self.hidden_size}, '
                f'got {rnn_states.shape[-1]}')
        rnn_states = rnn_states.reshape(-1, self.hidden_size)
        return gru_cell_pallas(obs, rnn_states, self.w_big, self.b_all)

    def rollout(self, obs_seq, rnn_states):
        """Apply the GRU step over a [T, N, F] sequence in ONE pallas_call.

        Amortizes launch + weight DMA over T steps (review item #1).  The
        original module's forward is a single step; this is the fused-rollout
        path for callers that step the RNN over time.
        """
        obs_seq = jnp.asarray(obs_seq, dtype=jnp.float32)
        h0 = jnp.asarray(rnn_states, dtype=jnp.float32).reshape(-1, self.hidden_size)
        return gru_rollout_pallas(obs_seq, h0, self.w_big, self.b_all)


# ----------------------------- references ----------------------------------


def _gru_ref_f32(x, h, w_ih, w_hh, b_ih, b_hh):
    """Pure-f32 PyTorch GRUCell semantics."""
    H = h.shape[-1]
    gi = x @ w_ih.T + b_ih
    gh = h @ w_hh.T + b_hh
    r = jax.nn.sigmoid(gi[:, :H] + gh[:, :H])
    z = jax.nn.sigmoid(gi[:, H:2 * H] + gh[:, H:2 * H])
    n = jnp.tanh(gi[:, 2 * H:] + r * gh[:, 2 * H:])
    return (1.0 - z) * n + z * h


def _rollout_ref(obs_pad_seq, h0, w_big, b_all):
    """Pure-JAX rollout using the exact same fused math as the kernel."""
    def step(h, x):
        h_new = _gru_step(x, h, w_big, b_all)
        return h_new, h_new
    _, hs = jax.lax.scan(step, h0, obs_pad_seq)
    return hs


# -------------------------------- main --------------------------------------


if __name__ == "__main__":
    # simple115 obs -> feat_dim=115, hidden (embed_dim)=32, num_players=4,
    # batch=2 -> N=8 rows; rollout length T=8.
    feat_dim = 115
    hidden_size = 32
    num_players = 4
    batch_size = 2
    N = batch_size * num_players
    T = 8

    key = jax.random.PRNGKey(0)
    k_obs, k_h, k_seq, k_params = jax.random.split(key, 4)

    obs = jax.random.normal(k_obs, (N, feat_dim), dtype=jnp.float32)
    rnn_states = jax.random.normal(k_h, (N, 1, hidden_size), dtype=jnp.float32)
    masks = jnp.ones((N, 1), dtype=jnp.float32)  # unused by forward (API parity)
    state = None

    backbone = BackbonePallas(feat_dim, hidden_size, num_players, k_params)

    # ---- single GRU step (the module's forward) ----
    out = backbone.forward(state, obs, rnn_states, masks)
    out = jax.block_until_ready(out)
    assert out.shape == (N, hidden_size)

    h0 = rnn_states.reshape(-1, hidden_size)
    x_pad = jnp.pad(obs, ((0, 0), (0, backbone.F_pad - feat_dim)))

    # 1) Tight check: same fused bf16-matmul / f32 math in plain JAX.
    ref_same = _gru_step(x_pad, h0, backbone.w_big, backbone.b_all)
    assert jnp.allclose(out, ref_same, atol=1e-3, rtol=1e-3), (
        f"mismatch vs fused bf16 reference: {jnp.max(jnp.abs(out - ref_same))}")

    # 2) Loose check: full-f32 PyTorch-semantics reference (bounds bf16 error).
    ref_f32 = _gru_ref_f32(obs, h0, backbone.weight_ih, backbone.weight_hh,
                           backbone.bias_ih, backbone.bias_hh)
    assert jnp.allclose(out, ref_f32, atol=5e-2, rtol=5e-2), (
        f"mismatch vs f32 reference: {jnp.max(jnp.abs(out - ref_f32))}")

    # ---- T-step fused rollout (amortized launch + weight DMA) ----
    obs_seq = jax.random.normal(k_seq, (T, N, feat_dim), dtype=jnp.float32)
    hs = backbone.rollout(obs_seq, rnn_states)
    hs = jax.block_until_ready(hs)
    assert hs.shape == (T, N, hidden_size)

    obs_seq_pad = jnp.pad(obs_seq, ((0, 0), (0, 0), (0, backbone.F_pad - feat_dim)))
    hs_ref = _rollout_ref(obs_seq_pad, h0, backbone.w_big, backbone.b_all)
    assert jnp.allclose(hs, hs_ref, atol=1e-3, rtol=1e-3), (
        f"rollout mismatch vs fused bf16 reference: {jnp.max(jnp.abs(hs - hs_ref))}")

    print("KERNEL_OK")
</pallas_src>

<mosaic_0001>
module attributes {stable_mosaic.version = 11 : i64} {
  func.func @_gru_cell_kernel(%arg0: memref<8x128xf32, #tpu.memory_space<vmem>>, %arg1: memref<8x32xf32, #tpu.memory_space<vmem>>, %arg2: memref<160x128xbf16, #tpu.memory_space<vmem>>, %arg3: memref<1x128xf32, #tpu.memory_space<vmem>>, %arg4: memref<8x32xf32, #tpu.memory_space<vmem>>) attributes {dimension_semantics = [], scalar_prefetch = 0 : i64, scratch_operands = 0 : i64, tpu.core_type = #tpu.core_type<tc>} {
    %c0 = arith.constant 0 : index
    %c0_0 = arith.constant 0 : index
    %0 = vector.load %arg0[%c0, %c0_0] : memref<8x128xf32, #tpu.memory_space<vmem>>, vector<8x128xf32>
    %c0_1 = arith.constant 0 : index
    %c0_2 = arith.constant 0 : index
    %1 = vector.load %arg1[%c0_1, %c0_2] : memref<8x32xf32, #tpu.memory_space<vmem>>, vector<8x32xf32>
    %c0_3 = arith.constant 0 : index
    %c0_4 = arith.constant 0 : index
    %2 = vector.load %arg2[%c0_3, %c0_4] : memref<160x128xbf16, #tpu.memory_space<vmem>>, vector<160x128xbf16>
    %c0_5 = arith.constant 0 : index
    %c0_6 = arith.constant 0 : index
    %3 = vector.load %arg3[%c0_5, %c0_6] : memref<1x128xf32, #tpu.memory_space<vmem>>, vector<1x128xf32>
    %4 = tpu.concatenate %0, %1 in 1 : vector<8x128xf32>, vector<8x32xf32> -> vector<8x160xf32>
    %5 = arith.truncf %4 : vector<8x160xf32> to vector<8x160xbf16>
    %cst = arith.constant dense<0.000000e+00> : vector<8x128xf32>
    %6 = tpu.matmul %5, %2, %cst {dimension_numbers = #tpu.dot_dimension_numbers<[1], [0], [0], [1], [0, 0, 1, 1], [], []>} : vector<8x160xbf16>, vector<160x128xbf16>, vector<8x128xf32> -> vector<8x128xf32>
    %7 = vector.broadcast %3 : vector<1x128xf32> to vector<8x128xf32>
    %8 = arith.addf %6, %7 : vector<8x128xf32>
    %9 = vector.extract_strided_slice %8 {offsets = [0, 0], sizes = [8, 64], strides = [1, 1]} : vector<8x128xf32> to vector<8x64xf32>
    %10 = arith.negf %9 : vector<8x64xf32>
    %11 = math.exp %10 : vector<8x64xf32>
    %cst_7 = arith.constant 1.000000e+00 : f32
    %12 = vector.broadcast %cst_7 : f32 to vector<8x64xf32>
    %13 = arith.addf %12, %11 : vector<8x64xf32>
    %14 = arith.divf %12, %13 : vector<8x64xf32>
    %15 = vector.extract_strided_slice %14 {offsets = [0, 0], sizes = [8, 32], strides = [1, 1]} : vector<8x64xf32> to vector<8x32xf32>
    %16 = vector.extract_strided_slice %14 {offsets = [0, 32], sizes = [8, 32], strides = [1, 1]} : vector<8x64xf32> to vector<8x32xf32>
    %17 = vector.extract_strided_slice %8 {offsets = [0, 64], sizes = [8, 32], strides = [1, 1]} : vector<8x128xf32> to vector<8x32xf32>
    %18 = vector.extract_strided_slice %8 {offsets = [0, 96], sizes = [8, 32], strides = [1, 1]} : vector<8x128xf32> to vector<8x32xf32>
    %19 = arith.mulf %15, %18 : vector<8x32xf32>
    %20 = arith.addf %17, %19 : vector<8x32xf32>
    %21 = math.tanh %20 : vector<8x32xf32>
    %cst_8 = arith.constant 1.000000e+00 : f32
    %22 = vector.broadcast %cst_8 : f32 to vector<8x32xf32>
    %23 = arith.subf %22, %16 : vector<8x32xf32>
    %24 = arith.mulf %23, %21 : vector<8x32xf32>
    %25 = arith.mulf %16, %1 : vector<8x32xf32>
    %26 = arith.addf %24, %25 : vector<8x32xf32>
    %c0_9 = arith.constant 0 : index
    %c0_10 = arith.constant 0 : index
    %27 = vector.load %arg4[%c0_9, %c0_10] : memref<8x32xf32, #tpu.memory_space<vmem>>, vector<8x32xf32>
    tpu.vector_store %arg4[%c0_9, %c0_10], %26 {strides = array<i32>} : memref<8x32xf32, #tpu.memory_space<vmem>>, vector<8x32xf32>,
    return
  }
}

</mosaic_0001>

<llo_original>
// kernel: gru_cell_pallas.1
$region0: #{gru_cell_pallas.1}
  #allocation0 [shape = 'u32[]', space=smem, size = 0x4, offset = 0x4, fixed_abs, tag = 'smem constant byte address 0x4 - core index']
  #allocation1 [shape = 'u32[144,128]{1,0:T(1,128)}', space=vmem, size = 0x12000, scoped, tag = 'internal scratch']
  %s0 = inlined_call_operand.vmem [shape: f32[8,128], index: 0, kind: input, shape index: {}]
  %s1 = inlined_call_operand.vmem [shape: f32[8,32], index: 1, kind: input, shape index: {}]
  %s2 = inlined_call_operand.hbm [shape: bf16[160,128], index: 2, kind: input, shape index: {}]
  %s3 = inlined_call_operand.vmem [shape: f32[1,128], index: 3, kind: input, shape index: {}]
  %s4 = inlined_call_operand.hbm [shape: f32[8,32], index: 4, kind: output, shape index: {}]
  %s5 = sld [smem:[#allocation0]]
  $region30: #{gru_cell_pallas.1} parent=0
    _
  %s7 = ssub.s32 1, %s5
  %s8 = scalar_select 0, %s7, %s5
  $region1: #{gru_cell_pallas.1} parent=0
    #allocation2 [shape = 'u8[40960]{0}', space=vmem, size = 0xa000, scoped, tag = 'input window, operand 2, single buffered']
    #allocation3 [shape = 's32[1]{0}', space=sflag, size = 0x4, scoped, tag = 'scoped memory for gru_cell_pallas.1']
    #allocation4 [shape = 's32[1]{0}', space=sflag, size = 0x4, scoped, tag = 'scoped memory for gru_cell_pallas.1']
    #allocation5 [shape = 'u8[4096]{0}', space=vmem, size = 0x1000, scoped, tag = 'output window, operand 0, single buffered']
    %9 = vsyncpa [#allocation3], 0
    %10 = vsyncpa [#allocation4], 0
    // Predicated region
    $region2: #{gru_cell_pallas.1} parent=1 // pred_check
      _
    $region3: #{gru_cell_pallas.1} parent=1 // pred_check_branch
      %12 = sbr.rel (0) target = $region5
    $region4: #{gru_cell_pallas.1} parent=1 // pred_region
      _
    $region5: #{gru_cell_pallas.1} parent=1 // pred_fallthru
      _
    // Predicated region
    $region6: #{gru_cell_pallas.1} parent=1 // pred_check
      _
    $region7: #{gru_cell_pallas.1} parent=1 // pred_check_branch
      %14 = sbr.rel (0) target = $region9
    $region8: #{gru_cell_pallas.1} parent=1 // pred_region
      _
    $region9: #{gru_cell_pallas.1} parent=1 // pred_fallthru
      _
    // Predicated region
    $region10: #{gru_cell_pallas.1} parent=1 // pred_check
      _
    $region11: #{gru_cell_pallas.1} parent=1 // pred_check_branch
      %16 = sbr.rel (0) target = $region13
    $region12: #{gru_cell_pallas.1} parent=1 // pred_region
      %s18 = ssub.s32 1280, 1280
      %19 = vsyncadd [#allocation3], %s18
      %s20 = sshll.u32 [#allocation2], 4
      %s21 = int_to_ptr.vmem [resolvable:$true] %s20
      %26 = dma.hbm_to_vmem [thread:$0]  %s2, 1280, %s21, [#allocation3], 64, 64, 4
    $region13: #{gru_cell_pallas.1} parent=1 // pred_fallthru
      _
    // Predicated region
    $region14: #{gru_cell_pallas.1} parent=1 // pred_check
      _
    $region15: #{gru_cell_pallas.1} parent=1 // pred_check_branch
      %28 = sbr.rel (0) target = $region17
    $region16: #{gru_cell_pallas.1} parent=1 // pred_region
      _
    $region17: #{gru_cell_pallas.1} parent=1 // pred_fallthru
      _
    // Predicated region
    $region18: #{gru_cell_pallas.1} parent=1 // pred_check
      _
    $region19: #{gru_cell_pallas.1} parent=1 // pred_check_branch
      %30 = sbr.rel (0) target = $region21
    $region20: #{gru_cell_pallas.1} parent=1 // pred_region
      %31 = dma.done [#allocation3], 1280
    $region21: #{gru_cell_pallas.1} parent=1 // pred_fallthru
      _
    %v33 = vld [vmem:[%s0] sm:$0xff]
    %v34 = vld [vmem:[%s1] sm:$0xff]
    %v35 = vld [vmem:[#allocation2] sm:$0xf]
    %v36 = vld [vmem:[#allocation2 + $0x4] sm:$0xf]
    %v37 = vld [vmem:[#allocation2 + $0x8] sm:$0xf]
    %v38 = vld [vmem:[#allocation2 + $0xc] sm:$0xf]
    %v39 = vld [vmem:[#allocation2 + $0x10] sm:$0xf]
    %v40 = vld [vmem:[#allocation2 + $0x14] sm:$0xf]
    %v41 = vld [vmem:[#allocation2 + $0x18] sm:$0xf]
    %v42 = vld [vmem:[#allocation2 + $0x1c] sm:$0xf]
    %v43 = vld [vmem:[#allocation2 + $0x20] sm:$0xf]
    %v44 = vld [vmem:[#allocation2 + $0x24] sm:$0xf]
    %v45 = vld [vmem:[#allocation2 + $0x28] sm:$0xf]
    %v46 = vld [vmem:[#allocation2 + $0x2c] sm:$0xf]
    %v47 = vld [vmem:[#allocation2 + $0x30] sm:$0xf]
    %v48 = vld [vmem:[#allocation2 + $0x34] sm:$0xf]
    %v49 = vld [vmem:[#allocation2 + $0x38] sm:$0xf]
    %v50 = vld [vmem:[#allocation2 + $0x3c] sm:$0xf]
    %v51 = vld [vmem:[#allocation2 + $0x40] sm:$0xf]
    %v52 = vld [vmem:[#allocation2 + $0x44] sm:$0xf]
    %v53 = vld [vmem:[#allocation2 + $0x48] sm:$0xf]
    %v54 = vld [vmem:[#allocation2 + $0x4c] sm:$0xf]
    %v55 = vld [vmem:[%s3] sm:$0x1]
    %v56 = vpack.c.bf16 %v33, %v33
    %v57 = vpack.c.bf16 %v34, %v34
    %v59 = vlaneseq
    %v60 = vshrl.u32 %v59, 7
    %v61 = vsub.s32 0, %v60
    %v62 = vrot.slane %v55, %v61
    %v84 = vunpack.c.l.b16 %v35
    %v85 = vunpack.c.l.b16 %v36
    %v86 = vunpack.c.l.b16 %v37
    %v87 = vunpack.c.l.b16 %v38
    %v88 = vunpack.c.l.b16 %v39
    %v89 = vunpack.c.l.b16 %v40
    %v90 = vunpack.c.l.b16 %v41
    %v91 = vunpack.c.l.b16 %v42
    %v92 = vunpack.c.l.b16 %v43
    %v93 = vunpack.c.l.b16 %v44
    %v94 = vunpack.c.l.b16 %v45
    %v95 = vunpack.c.l.b16 %v46
    %v96 = vunpack.c.l.b16 %v47
    %v97 = vunpack.c.l.b16 %v48
    %v98 = vunpack.c.l.b16 %v49
    %v99 = vunpack.c.l.b16 %v50
    %v100 = vunpack.c.l.b16 %v51
    %v101 = vunpack.c.l.b16 %v52
    %v102 = vunpack.c.l.b16 %v53
    %v103 = vunpack.c.l.b16 %v54
    %v104 = vpack.c.b16 %v85, %v84
    %v105 = vpack.c.b16 %v87, %v86
    %v106 = vpack.c.b16 %v89, %v88
    %v107 = vpack.c.b16 %v91, %v90
    %v108 = vpack.c.b16 %v93, %v92
    %v109 = vpack.c.b16 %v95, %v94
    %v110 = vpack.c.b16 %v97, %v96
    %v111 = vpack.c.b16 %v99, %v98
    %v112 = vpack.c.b16 %v101, %v100
    %v113 = vpack.c.b16 %v103, %v102
    %vm124 = vcmask 261120
    %v126 = vsel %vm124, %v57, 0
    %128 = vmatprep.subr.bf16.mxu0 0
    %129 = vmatpush1.bf16.msra.mxu0 %v111
    %130 = vmatprep.subr.bf16.mxu0 0
    %131 = vmatpush1.bf16.msra.mxu0 %v110
    %132 = vmatprep.subr.bf16.mxu0 0
    %133 = vmatpush1.bf16.msra.mxu0 %v109
    %134 = vmatprep.subr.bf16.mxu0 0
    %135 = vmatpush1.bf16.msra.mxu0 %v108
    %136 = vmatprep.subr.bf16.mxu0 0
    %137 = vmatpush1.bf16.msra.mxu0 %v107
    %138 = vmatprep.subr.bf16.mxu0 0
    %139 = vmatpush1.bf16.msra.mxu0 %v106
    %140 = vmatprep.subr.bf16.mxu0 0
    %141 = vmatpush1.bf16.msra.mxu0 %v105
    %142 = vmatprep.subr.bf16.mxu0 0
    %143 = vmatpush1.bf16.msra.mxu0 %v104
    %144 = vmatprep.subr.bf16.mxu0 0
    %145 = vmatpush2.bf16.msra.mxu0 0
    %146 = vmatprep.subr.bf16.mxu0 0
    %147 = vmatpush2.bf16.msra.mxu0 0
    %148 = vmatprep.subr.bf16.mxu0 0
    %149 = vmatpush2.bf16.msra.mxu0 0
    %150 = vmatprep.subr.bf16.mxu0 0
    %151 = vmatpush2.bf16.msra.mxu0 0
    %152 = vmatprep.subr.bf16.mxu0 0
    %153 = vmatpush2.bf16.msra.mxu0 0
    %154 = vmatprep.subr.bf16.mxu0 0
    %155 = vmatpush2.bf16.msra.mxu0 0
    %156 = vmatprep.subr.bf16.mxu0 0
    %157 = vmatpush2.bf16.msra.mxu0 %v113
    %158 = vmatprep.subr.bf16.mxu0 0
    %159 = vmatpush2.bf16.msra.mxu0 %v112
    %160 = vmatprep.mubr.bf16.mxu0 %v126
    %161 = vmatmul.mubr.bf16.gmra.mxu0 %v56
    %v162 = vpop.f32.mrf.mxu0
    %v163 = vadd.f32 %v62, %v162
    %v164 = vpop.f32.mrf.mxu0
    %v165 = vpop.f32.mrf.mxu0
    %v166 = vpop.f32.mrf.mxu0
    %167 = vdwg.mxu0
    %v168 = vxor.u32 %v163, 2147483648
    %v169 = vmul.f32 %v168, 1.442695
    %v170 = vpow.pop %v169
    %v171 = vadd.f32 %v170, 1.0
    %v172 = vrcp.pop %v171
    %v173 = vmul.f32 1.0, %v172
    %175 = vrot.lane.b32.xlu0 %v163, 32
    %v176 = vpop.permute.xlu0 %175
    %v178 = vmul.f32 %v173, %v176
    %180 = vrot.lane.b32.xlu0 %v178, 64
    %v181 = vpop.permute.xlu0 %180
    %v183 = vadd.f32 %v163, %v181
    %v184 = vtanh.pop %v183
    %v185 = vsub.f32 1.0, %v173
    %187 = vrot.lane.b32.xlu0 %v184, 96
    %v188 = vpop.permute.xlu0 %187
    %v190 = vmul.f32 %v185, %v188
    %192 = vrot.lane.b32.xlu0 %v34, 32
    %v193 = vpop.permute.xlu0 %192
    %v195 = vmul.f32 %v173, %v193
    %v196 = vadd.f32 %v190, %v195
    %198 = vrot.lane.b32.xlu0 %v196, 96
    %v199 = vpop.permute.xlu0 %198
    %201 = vst.msk [vmem:[#allocation5] sm:$0xff] %vm124, %v199
    // Predicated region
    $region22: #{gru_cell_pallas.1} parent=1 // pred_check
      _
    $region23: #{gru_cell_pallas.1} parent=1 // pred_check_branch
      %203 = sbr.rel (0) target = $region25
    $region24: #{gru_cell_pallas.1} parent=1 // pred_region
      %s205 = ssub.s32 128, 128
      %206 = vsyncadd [#allocation4], %s205
      %s208 = sshll.u32 [#allocation5], 4
      %s209 = int_to_ptr.vmem [resolvable:$true] %s208
      %211 = dma.vmem_to_hbm [thread:$0]  %s209, 128, %s4, [#allocation4]
    $region25: #{gru_cell_pallas.1} parent=1 // pred_fallthru
      _
    // Predicated region
    $region26: #{gru_cell_pallas.1} parent=1 // pred_check
      _
    $region27: #{gru_cell_pallas.1} parent=1 // pred_check_branch
      %213 = sbr.rel (0) target = $region29
    $region28: #{gru_cell_pallas.1} parent=1 // pred_region
      %214 = dma.done [#allocation4], 128
    $region29: #{gru_cell_pallas.1} parent=1 // pred_fallthru
      _
    %215 = vsyncpa [#allocation3], 1
    %216 = vsyncpa [#allocation4], 1

</llo_original>
